<compile_context>
chip_gen: v6e
topology: v6e:2x2x1
jax: 0.10.0
libtpu: 0.0.40
codegen_flags: <defaults>
</compile_context>

<pallas_src>
import jax
import jax.numpy as jnp
from jax.experimental import pallas as pl
from jax.experimental.pallas import tpu as pltpu


def _add_kernel(a_ref, b_ref, o_ref):
    # Single VPU pass over the whole (VMEM-resident) block.
    o_ref[...] = a_ref[...] + b_ref[...]


def pallas_add(x226, x211):
    assert x226.shape == x211.shape and x226.dtype == x211.dtype
    n, c, h, w = x226.shape

    # Contiguous (free) reshape: lane axis = H*W, sublane axis = N*C.
    a2 = x226.reshape(n * c, h * w)
    b2 = x211.reshape(n * c, h * w)

    out2 = pl.pallas_call(
        _add_kernel,
        out_shape=jax.ShapeDtypeStruct(a2.shape, a2.dtype),
        # No grid: whole arrays as single VMEM blocks (no per-step pipeline
        # overhead, no double-buffering for an un-pipelineable 1-point grid).
        in_specs=[
            pl.BlockSpec(memory_space=pltpu.MemorySpace.VMEM),
            pl.BlockSpec(memory_space=pltpu.MemorySpace.VMEM),
        ],
        out_specs=pl.BlockSpec(memory_space=pltpu.MemorySpace.VMEM),
        # Let the output reuse x226's buffer when the caller can donate it.
        input_output_aliases={0: 0},
    )(a2, b2)

    return out2.reshape(n, c, h, w)


if __name__ == "__main__":
    key = jax.random.PRNGKey(0)
    k1, k2 = jax.random.split(key)
    # Shapes consistent with the module: [1, 136, 14, 14]
    x226 = jax.random.normal(k1, (1, 136, 14, 14), dtype=jnp.float32)
    x211 = jax.random.normal(k2, (1, 136, 14, 14), dtype=jnp.float32)

    # Reference computed first (output may alias/donate x226's buffer).
    ref = x226 + x211

    out = pallas_add(x226, x211)
    jax.block_until_ready(out)

    assert out.shape == (1, 136, 14, 14)
    assert jnp.allclose(out, ref, atol=1e-6, rtol=1e-6)

    print("KERNEL_OK")
</pallas_src>

<mosaic_0001>
module attributes {stable_mosaic.version = 11 : i64} {
  func.func @_add_kernel(%arg0: memref<136x196xf32, #tpu.memory_space<vmem>>, %arg1: memref<136x196xf32, #tpu.memory_space<vmem>>, %arg2: memref<136x196xf32, #tpu.memory_space<vmem>>) attributes {dimension_semantics = [], scalar_prefetch = 0 : i64, scratch_operands = 0 : i64, tpu.core_type = #tpu.core_type<tc>} {
    %c0 = arith.constant 0 : index
    %c0_0 = arith.constant 0 : index
    %0 = vector.load %arg0[%c0, %c0_0] : memref<136x196xf32, #tpu.memory_space<vmem>>, vector<136x196xf32>
    %c0_1 = arith.constant 0 : index
    %c0_2 = arith.constant 0 : index
    %1 = vector.load %arg1[%c0_1, %c0_2] : memref<136x196xf32, #tpu.memory_space<vmem>>, vector<136x196xf32>
    %2 = arith.addf %0, %1 : vector<136x196xf32>
    %c0_3 = arith.constant 0 : index
    %c0_4 = arith.constant 0 : index
    %3 = vector.load %arg2[%c0_3, %c0_4] : memref<136x196xf32, #tpu.memory_space<vmem>>, vector<136x196xf32>
    tpu.vector_store %arg2[%c0_3, %c0_4], %2 {strides = array<i32>} : memref<136x196xf32, #tpu.memory_space<vmem>>, vector<136x196xf32>,
    return
  }
}

</mosaic_0001>

<llo_original>
// kernel: tpu_custom_call.1
$region0: #{tpu_custom_call.1}
  #allocation0 [shape = 'u32[]', space=smem, size = 0x4, offset = 0x4, fixed_abs, tag = 'smem constant byte address 0x4 - core index']
  #allocation1 [shape = 'u32[144,128]{1,0:T(1,128)}', space=vmem, size = 0x12000, scoped, tag = 'internal scratch']
  %s0 = inlined_call_operand.hbm [shape: f32[136,196], index: 0, kind: input, shape index: {}, may-alias: {0,2}]
  %s1 = inlined_call_operand.vmem [shape: f32[136,196], index: 1, kind: input, shape index: {}]
  %s2 = inlined_call_operand.hbm [shape: f32[136,196], index: 2, kind: output, shape index: {}, may-alias: {0,2}]
  %s3 = sld [smem:[#allocation0]]
  $region22: #{tpu_custom_call.1} parent=0
    _
  %s5 = ssub.s32 1, %s3
  %s6 = scalar_select 0, %s5, %s3
  $region1: #{tpu_custom_call.1} parent=0
    #allocation2 [shape = 'u8[139264]{0}', space=vmem, size = 0x22000, scoped, tag = 'input window, operand 0, single buffered']
    #allocation3 [shape = 's32[1]{0}', space=sflag, size = 0x4, scoped, tag = 'scoped memory for tpu_custom_call.1']
    #allocation4 [shape = 's32[1]{0}', space=sflag, size = 0x4, scoped, tag = 'scoped memory for tpu_custom_call.1']
    #allocation5 [shape = 'u8[139264]{0}', space=vmem, size = 0x22000, scoped, tag = 'output window, operand 0, single buffered']
    %7 = vsyncpa [#allocation3], 0
    %8 = vsyncpa [#allocation4], 0
    // Predicated region
    $region2: #{tpu_custom_call.1} parent=1 // pred_check
      _
    $region3: #{tpu_custom_call.1} parent=1 // pred_check_branch
      %10 = sbr.rel (0) target = $region5
    $region4: #{tpu_custom_call.1} parent=1 // pred_region
      %s12 = ssub.s32 4352, 4352
      %13 = vsyncadd [#allocation3], %s12
      %s14 = sshll.u32 [#allocation2], 4
      %s15 = int_to_ptr.vmem [resolvable:$true] %s14
      %20 = dma.hbm_to_vmem [thread:$0]  %s0, 4352, %s15, [#allocation3], 256, 256, 16
    $region5: #{tpu_custom_call.1} parent=1 // pred_fallthru
      _
    // Predicated region
    $region6: #{tpu_custom_call.1} parent=1 // pred_check
      _
    $region7: #{tpu_custom_call.1} parent=1 // pred_check_branch
      %22 = sbr.rel (0) target = $region9
    $region8: #{tpu_custom_call.1} parent=1 // pred_region
      _
    $region9: #{tpu_custom_call.1} parent=1 // pred_fallthru
      _
    // Predicated region
    $region10: #{tpu_custom_call.1} parent=1 // pred_check
      _
    $region11: #{tpu_custom_call.1} parent=1 // pred_check_branch
      %24 = sbr.rel (0) target = $region13
    $region12: #{tpu_custom_call.1} parent=1 // pred_region
      %25 = dma.done [#allocation3], 4352
    $region13: #{tpu_custom_call.1} parent=1 // pred_fallthru
      _
    %v26 = vld [vmem:[#allocation2] sm:$0xff]
    %v27 = vld [vmem:[#allocation2 + $0x8] sm:$0xff]
    %v28 = vld [vmem:[#allocation2 + $0x10] sm:$0xff]
    %v29 = vld [vmem:[#allocation2 + $0x18] sm:$0xff]
    %v30 = vld [vmem:[#allocation2 + $0x20] sm:$0xff]
    %v31 = vld [vmem:[#allocation2 + $0x28] sm:$0xff]
    %v32 = vld [vmem:[#allocation2 + $0x30] sm:$0xff]
    %v33 = vld [vmem:[#allocation2 + $0x38] sm:$0xff]
    %v34 = vld [vmem:[#allocation2 + $0x40] sm:$0xff]
    %v35 = vld [vmem:[#allocation2 + $0x48] sm:$0xff]
    %v36 = vld [vmem:[#allocation2 + $0x50] sm:$0xff]
    %v37 = vld [vmem:[#allocation2 + $0x58] sm:$0xff]
    %v38 = vld [vmem:[#allocation2 + $0x60] sm:$0xff]
    %v39 = vld [vmem:[#allocation2 + $0x68] sm:$0xff]
    %v40 = vld [vmem:[#allocation2 + $0x70] sm:$0xff]
    %v41 = vld [vmem:[#allocation2 + $0x78] sm:$0xff]
    %v42 = vld [vmem:[#allocation2 + $0x80] sm:$0xff]
    %v43 = vld [vmem:[#allocation2 + $0x88] sm:$0xff]
    %v44 = vld [vmem:[#allocation2 + $0x90] sm:$0xff]
    %v45 = vld [vmem:[#allocation2 + $0x98] sm:$0xff]
    %v46 = vld [vmem:[#allocation2 + $0xa0] sm:$0xff]
    %v47 = vld [vmem:[#allocation2 + $0xa8] sm:$0xff]
    %v48 = vld [vmem:[#allocation2 + $0xb0] sm:$0xff]
    %v49 = vld [vmem:[#allocation2 + $0xb8] sm:$0xff]
    %v50 = vld [vmem:[#allocation2 + $0xc0] sm:$0xff]
    %v51 = vld [vmem:[#allocation2 + $0xc8] sm:$0xff]
    %v52 = vld [vmem:[#allocation2 + $0xd0] sm:$0xff]
    %v53 = vld [vmem:[#allocation2 + $0xd8] sm:$0xff]
    %v54 = vld [vmem:[#allocation2 + $0xe0] sm:$0xff]
    %v55 = vld [vmem:[#allocation2 + $0xe8] sm:$0xff]
    %v56 = vld [vmem:[#allocation2 + $0xf0] sm:$0xff]
    %v57 = vld [vmem:[#allocation2 + $0xf8] sm:$0xff]
    %v58 = vld [vmem:[#allocation2 + $0x100] sm:$0xff]
    %v59 = vld [vmem:[#allocation2 + $0x108] sm:$0xff]
    %v60 = vld [vmem:[%s1] sm:$0xff]
    %v61 = vld [vmem:[%s1 + $0x8] sm:$0xff]
    %v62 = vld [vmem:[%s1 + $0x10] sm:$0xff]
    %v63 = vld [vmem:[%s1 + $0x18] sm:$0xff]
    %v64 = vld [vmem:[%s1 + $0x20] sm:$0xff]
    %v65 = vld [vmem:[%s1 + $0x28] sm:$0xff]
    %v66 = vld [vmem:[%s1 + $0x30] sm:$0xff]
    %v67 = vld [vmem:[%s1 + $0x38] sm:$0xff]
    %v68 = vld [vmem:[%s1 + $0x40] sm:$0xff]
    %v69 = vld [vmem:[%s1 + $0x48] sm:$0xff]
    %v70 = vld [vmem:[%s1 + $0x50] sm:$0xff]
    %v71 = vld [vmem:[%s1 + $0x58] sm:$0xff]
    %v72 = vld [vmem:[%s1 + $0x60] sm:$0xff]
    %v73 = vld [vmem:[%s1 + $0x68] sm:$0xff]
    %v74 = vld [vmem:[%s1 + $0x70] sm:$0xff]
    %v75 = vld [vmem:[%s1 + $0x78] sm:$0xff]
    %v76 = vld [vmem:[%s1 + $0x80] sm:$0xff]
    %v77 = vld [vmem:[%s1 + $0x88] sm:$0xff]
    %v78 = vld [vmem:[%s1 + $0x90] sm:$0xff]
    %v79 = vld [vmem:[%s1 + $0x98] sm:$0xff]
    %v80 = vld [vmem:[%s1 + $0xa0] sm:$0xff]
    %v81 = vld [vmem:[%s1 + $0xa8] sm:$0xff]
    %v82 = vld [vmem:[%s1 + $0xb0] sm:$0xff]
    %v83 = vld [vmem:[%s1 + $0xb8] sm:$0xff]
    %v84 = vld [vmem:[%s1 + $0xc0] sm:$0xff]
    %v85 = vld [vmem:[%s1 + $0xc8] sm:$0xff]
    %v86 = vld [vmem:[%s1 + $0xd0] sm:$0xff]
    %v87 = vld [vmem:[%s1 + $0xd8] sm:$0xff]
    %v88 = vld [vmem:[%s1 + $0xe0] sm:$0xff]
    %v89 = vld [vmem:[%s1 + $0xe8] sm:$0xff]
    %v90 = vld [vmem:[%s1 + $0xf0] sm:$0xff]
    %v91 = vld [vmem:[%s1 + $0xf8] sm:$0xff]
    %v92 = vld [vmem:[%s1 + $0x100] sm:$0xff]
    %v93 = vld [vmem:[%s1 + $0x108] sm:$0xff]
    %v94 = vadd.f32 %v26, %v60
    %v95 = vadd.f32 %v27, %v61
    %v96 = vadd.f32 %v28, %v62
    %v97 = vadd.f32 %v29, %v63
    %v98 = vadd.f32 %v30, %v64
    %v99 = vadd.f32 %v31, %v65
    %v100 = vadd.f32 %v32, %v66
    %v101 = vadd.f32 %v33, %v67
    %v102 = vadd.f32 %v34, %v68
    %v103 = vadd.f32 %v35, %v69
    %v104 = vadd.f32 %v36, %v70
    %v105 = vadd.f32 %v37, %v71
    %v106 = vadd.f32 %v38, %v72
    %v107 = vadd.f32 %v39, %v73
    %v108 = vadd.f32 %v40, %v74
    %v109 = vadd.f32 %v41, %v75
    %v110 = vadd.f32 %v42, %v76
    %v111 = vadd.f32 %v43, %v77
    %v112 = vadd.f32 %v44, %v78
    %v113 = vadd.f32 %v45, %v79
    %v114 = vadd.f32 %v46, %v80
    %v115 = vadd.f32 %v47, %v81
    %v116 = vadd.f32 %v48, %v82
    %v117 = vadd.f32 %v49, %v83
    %v118 = vadd.f32 %v50, %v84
    %v119 = vadd.f32 %v51, %v85
    %v120 = vadd.f32 %v52, %v86
    %v121 = vadd.f32 %v53, %v87
    %v122 = vadd.f32 %v54, %v88
    %v123 = vadd.f32 %v55, %v89
    %v124 = vadd.f32 %v56, %v90
    %v125 = vadd.f32 %v57, %v91
    %v126 = vadd.f32 %v58, %v92
    %v127 = vadd.f32 %v59, %v93
    %128 = vst [vmem:[#allocation5] sm:$0xff] %v94
    %vm129 = vcmask 556032
    %130 = vst.msk [vmem:[#allocation5 + $0x8] sm:$0xff] %vm129, %v95
    %131 = vst [vmem:[#allocation5 + $0x10] sm:$0xff] %v96
    %132 = vst.msk [vmem:[#allocation5 + $0x18] sm:$0xff] %vm129, %v97
    %133 = vst [vmem:[#allocation5 + $0x20] sm:$0xff] %v98
    %134 = vst.msk [vmem:[#allocation5 + $0x28] sm:$0xff] %vm129, %v99
    %135 = vst [vmem:[#allocation5 + $0x30] sm:$0xff] %v100
    %136 = vst.msk [vmem:[#allocation5 + $0x38] sm:$0xff] %vm129, %v101
    %137 = vst [vmem:[#allocation5 + $0x40] sm:$0xff] %v102
    %138 = vst.msk [vmem:[#allocation5 + $0x48] sm:$0xff] %vm129, %v103
    %139 = vst [vmem:[#allocation5 + $0x50] sm:$0xff] %v104
    %140 = vst.msk [vmem:[#allocation5 + $0x58] sm:$0xff] %vm129, %v105
    %141 = vst [vmem:[#allocation5 + $0x60] sm:$0xff] %v106
    %142 = vst.msk [vmem:[#allocation5 + $0x68] sm:$0xff] %vm129, %v107
    %143 = vst [vmem:[#allocation5 + $0x70] sm:$0xff] %v108
    %144 = vst.msk [vmem:[#allocation5 + $0x78] sm:$0xff] %vm129, %v109
    %145 = vst [vmem:[#allocation5 + $0x80] sm:$0xff] %v110
    %146 = vst.msk [vmem:[#allocation5 + $0x88] sm:$0xff] %vm129, %v111
    %147 = vst [vmem:[#allocation5 + $0x90] sm:$0xff] %v112
    %148 = vst.msk [vmem:[#allocation5 + $0x98] sm:$0xff] %vm129, %v113
    %149 = vst [vmem:[#allocation5 + $0xa0] sm:$0xff] %v114
    %150 = vst.msk [vmem:[#allocation5 + $0xa8] sm:$0xff] %vm129, %v115
    %151 = vst [vmem:[#allocation5 + $0xb0] sm:$0xff] %v116
    %152 = vst.msk [vmem:[#allocation5 + $0xb8] sm:$0xff] %vm129, %v117
    %153 = vst [vmem:[#allocation5 + $0xc0] sm:$0xff] %v118
    %154 = vst.msk [vmem:[#allocation5 + $0xc8] sm:$0xff] %vm129, %v119
    %155 = vst [vmem:[#allocation5 + $0xd0] sm:$0xff] %v120
    %156 = vst.msk [vmem:[#allocation5 + $0xd8] sm:$0xff] %vm129, %v121
    %157 = vst [vmem:[#allocation5 + $0xe0] sm:$0xff] %v122
    %158 = vst.msk [vmem:[#allocation5 + $0xe8] sm:$0xff] %vm129, %v123
    %159 = vst [vmem:[#allocation5 + $0xf0] sm:$0xff] %v124
    %160 = vst.msk [vmem:[#allocation5 + $0xf8] sm:$0xff] %vm129, %v125
    %161 = vst [vmem:[#allocation5 + $0x100] sm:$0xff] %v126
    %162 = vst.msk [vmem:[#allocation5 + $0x108] sm:$0xff] %vm129, %v127
    // Predicated region
    $region14: #{tpu_custom_call.1} parent=1 // pred_check
      _
    $region15: #{tpu_custom_call.1} parent=1 // pred_check_branch
      %164 = sbr.rel (0) target = $region17
    $region16: #{tpu_custom_call.1} parent=1 // pred_region
      %s166 = ssub.s32 4352, 4352
      %167 = vsyncadd [#allocation4], %s166
      %s168 = sshll.u32 [#allocation5], 4
      %s169 = int_to_ptr.vmem [resolvable:$true] %s168
      %174 = dma.vmem_to_hbm [thread:$0]  %s169, 4352, %s2, [#allocation4], 256, 256, 16
    $region17: #{tpu_custom_call.1} parent=1 // pred_fallthru
      _
    // Predicated region
    $region18: #{tpu_custom_call.1} parent=1 // pred_check
      _
    $region19: #{tpu_custom_call.1} parent=1 // pred_check_branch
      %176 = sbr.rel (0) target = $region21
    $region20: #{tpu_custom_call.1} parent=1 // pred_region
      %177 = dma.done [#allocation4], 4352
    $region21: #{tpu_custom_call.1} parent=1 // pred_fallthru
      _
    %178 = vsyncpa [#allocation3], 1
    %179 = vsyncpa [#allocation4], 1

</llo_original>
